<compile_context>
chip_gen: v6e
topology: v6e:2x2x1
jax: 0.10.0
libtpu: 0.0.40
codegen_flags: <defaults>
</compile_context>

<pallas_src>
import jax
import jax.numpy as jnp
from jax.experimental import pallas as pl
from jax.experimental.pallas import tpu as pltpu


# --------------------------------------------------------------------------
# Kernel bodies
# --------------------------------------------------------------------------
def _dense_kernel_single(x_ref, w_ref, b_ref, o_ref):
    # Whole contraction fits in one K step: fused matmul + bias + ReLU.
    y = jnp.dot(x_ref[...], w_ref[...], preferred_element_type=jnp.float32)
    o_ref[...] = jnp.maximum(y + b_ref[...], 0.0).astype(o_ref.dtype)


def _dense_kernel_kres(x_ref, w_ref, b_ref, o_ref):
    # f32 output: the K-resident output tile itself is the accumulator
    # (saves tm*tn*4 bytes of VMEM and one tile copy on finalize).
    k = pl.program_id(2)
    prod = jnp.dot(x_ref[...], w_ref[...], preferred_element_type=jnp.float32)

    @pl.when(k == 0)
    def _():
        o_ref[...] = prod

    @pl.when(k > 0)
    def _():
        o_ref[...] += prod

    @pl.when(k == pl.num_programs(2) - 1)
    def _():
        o_ref[...] = jnp.maximum(o_ref[...] + b_ref[...], 0.0)


def _dense_kernel_acc(x_ref, w_ref, b_ref, o_ref, acc_ref):
    # Sub-f32 output: f32 scratch accumulator, cast only on the last K step.
    k = pl.program_id(2)

    @pl.when(k == 0)
    def _():
        acc_ref[...] = jnp.zeros_like(acc_ref)

    acc_ref[...] += jnp.dot(x_ref[...], w_ref[...],
                            preferred_element_type=jnp.float32)

    @pl.when(k == pl.num_programs(2) - 1)
    def _():
        o_ref[...] = jnp.maximum(acc_ref[...] + b_ref[...], 0.0
                                 ).astype(o_ref.dtype)


# --------------------------------------------------------------------------
# Helpers
# --------------------------------------------------------------------------
def _round_up(x, m):
    return (x + m - 1) // m * m


def _pick_tile(padded_dim, max_tile, unit):
    """Largest multiple of `unit` <= max_tile that divides padded_dim
    (or the whole dim if it already fits)."""
    if padded_dim <= max_tile:
        return padded_dim
    t = (max_tile // unit) * unit
    while t > unit:
        if padded_dim % t == 0:
            return t
        t -= unit
    return unit


def _vmem_budget_bytes():
    """Generation-aware scoped-VMEM target + detected capacity."""
    try:
        cap = int(pltpu.get_tpu_info().vmem_capacity_bytes)
    except Exception:
        cap = 64 * 2**20  # conservative: v7x has 64 MiB per TensorCore
    if cap >= 100 * 2**20:                       # v5e / v6e (128 MiB physical)
        return 100 * 2**20, cap
    # v7x-like: leave headroom for Mosaic internal scratch
    return min(cap - 16 * 2**20, 48 * 2**20), cap


# --------------------------------------------------------------------------
# Module
# --------------------------------------------------------------------------
class DenseRelu:
    """Pallas TPU port of FOV `Dense`: y = relu(x @ W^T + b).

    The weight/bias are padded & relaid out once here (parameter setup),
    never in the per-call hot path.
    """

    def __init__(self, weight, bias, compute_dtype=None):
        out_units, in_units = weight.shape
        assert bias.shape == (out_units,)
        self.in_units, self.out_units = in_units, out_units
        self.compute_dtype = jnp.dtype(compute_dtype if compute_dtype is not None
                                       else weight.dtype)

        # One-time pad + relayout: (OUT, IN) -> (IN_pad, OUT_pad), lane-padded.
        self.in_pad = _round_up(in_units, 128)
        self.out_pad = _round_up(out_units, 128)
        w = jnp.asarray(weight)
        if (out_units, in_units) != (self.out_pad, self.in_pad):
            w = jnp.pad(w, ((0, self.out_pad - out_units),
                            (0, self.in_pad - in_units)))
        self.w_t = jnp.asarray(w.T, dtype=self.compute_dtype)     # (IN_pad, OUT_pad)

        b = jnp.asarray(bias, dtype=jnp.float32)
        if out_units != self.out_pad:
            b = jnp.pad(b, (0, self.out_pad - out_units))
        self.b2d = b.reshape(1, self.out_pad)                     # f32 bias row

    def __call__(self, x):
        B, in_units = x.shape
        assert in_units == self.in_units
        out_dtype = x.dtype
        cdt = self.compute_dtype
        celt = cdt.itemsize
        oelt = jnp.dtype(out_dtype).itemsize
        # dtype-native sublane packing: 8 (f32) / 16 (bf16) / 32 (int8, fp8)
        pack = {4: 8, 2: 16, 1: 32}.get(celt, 8)

        in_pad, out_pad = self.in_pad, self.out_pad
        Bp = _round_up(B, pack)

        x_c = x.astype(cdt) if x.dtype != cdt else x
        if (Bp, in_pad) != (B, in_units):
            x_c = jnp.pad(x_c, ((0, Bp - B), (0, in_pad - in_units)))

        budget, vmem_cap = _vmem_budget_bytes()

        # ---- tile selection ------------------------------------------------
        if B <= 256:
            # Weight-streaming regime: no batch tiling, collapse K, wide lanes.
            tm = Bp
            tn_target, tk_target = 512, in_pad
        else:
            tm = _pick_tile(Bp, 512, pack)
            tn_target, tk_target = 512, 1024
        tn = _pick_tile(out_pad, tn_target, 128)
        tk = _pick_tile(in_pad, tk_target, 128)

        def vmem_need(tm_, tn_, tk_):
            return (2 * celt * tm_ * tk_        # x tiles (double-buffered)
                    + 2 * celt * tk_ * tn_      # W tiles (double-buffered)
                    + 2 * oelt * tm_ * tn_      # out tiles (double-buffered)
                    + 4 * tm_ * tn_             # f32 accumulator (worst case)
                    + 2 * 4 * tn_)              # bias slices

        while vmem_need(tm, tn, tk) > budget:
            if tk >= tn and tk > 128:
                tk = _pick_tile(in_pad, max(tk // 2, 128), 128)
            elif tn > 128:
                tn = _pick_tile(out_pad, max(tn // 2, 128), 128)
            elif tm > pack:
                tm = _pick_tile(Bp, max(tm // 2, pack), pack)
            else:
                break

        # v7x has 2 TensorCores/chip: keep >=2 blocks on a parallel axis so
        # megacore sharding has something to split (v5e/v6e unaffected).
        if vmem_cap < 100 * 2**20 and (Bp // tm) * (out_pad // tn) == 1:
            if out_pad // 128 >= 2:
                tn = _pick_tile(out_pad, max(tn // 2, 128), 128)
            elif Bp // pack >= 2:
                tm = _pick_tile(Bp, max(tm // 2, pack), pack)

        grid = (Bp // tm, out_pad // tn, in_pad // tk)

        if grid[2] == 1:
            kernel = _dense_kernel_single
            scratch = []
        elif out_dtype == jnp.float32:
            kernel = _dense_kernel_kres
            scratch = []
        else:
            kernel = _dense_kernel_acc
            scratch = [pltpu.VMEM((tm, tn), jnp.float32)]

        need = vmem_need(tm, tn, tk)
        vmem_limit = int(min(max(2 * need, 32 * 2**20), budget))

        cost = pl.CostEstimate(
            flops=2 * Bp * in_pad * out_pad,
            transcendentals=0,
            bytes_accessed=(x_c.size * celt + self.w_t.size * celt
                            + self.b2d.size * 4 + Bp * out_pad * oelt),
        )

        out = pl.pallas_call(
            kernel,
            out_shape=jax.ShapeDtypeStruct((Bp, out_pad), out_dtype),
            grid_spec=pltpu.PrefetchScalarGridSpec(
                num_scalar_prefetch=0,
                grid=grid,
                in_specs=[
                    pl.BlockSpec((tm, tk), lambda i, j, k: (i, k)),   # x tile
                    pl.BlockSpec((tk, tn), lambda i, j, k: (k, j)),   # W^T tile
                    pl.BlockSpec((1, tn), lambda i, j, k: (0, j)),    # bias slice
                ],
                out_specs=pl.BlockSpec((tm, tn), lambda i, j, k: (i, j)),
                scratch_shapes=scratch,
            ),
            compiler_params=pltpu.CompilerParams(
                dimension_semantics=("parallel", "parallel", "arbitrary"),
                vmem_limit_bytes=vmem_limit,
            ),
            cost_estimate=cost,
        )(x_c, self.w_t, self.b2d)

        if (Bp, out_pad) != (B, self.out_units):
            out = out[:B, :self.out_units]
        return out


def dense_relu_ref(x, weight, bias):
    return jnp.maximum(x @ weight.T + bias, 0.0)


# --------------------------------------------------------------------------
# Self-test
# --------------------------------------------------------------------------
def _run_case(key, batch, in_units, out_units, compute_dtype=None,
              atol=1e-5, rtol=1e-5):
    k_x, k_w, k_b = jax.random.split(key, 3)
    x = jax.random.normal(k_x, (batch, in_units), dtype=jnp.float32)
    bound = 1.0 / (in_units ** 0.5)
    weight = jax.random.uniform(k_w, (out_units, in_units),
                                minval=-bound, maxval=bound, dtype=jnp.float32)
    bias = jax.random.uniform(k_b, (out_units,),
                              minval=-bound, maxval=bound, dtype=jnp.float32)

    layer = DenseRelu(weight, bias, compute_dtype=compute_dtype)
    out = layer(x)
    jax.block_until_ready(out)

    ref = dense_relu_ref(x, weight, bias)
    assert out.shape == (batch, out_units)
    assert jnp.allclose(out, ref, atol=atol, rtol=rtol), (
        f"mismatch: max abs err {jnp.max(jnp.abs(out - ref))}")


if __name__ == "__main__":
    key = jax.random.PRNGKey(0)
    k1, k2, k3 = jax.random.split(key, 3)

    # Small, tile-aligned case (plain FC layer, as the module implies).
    _run_case(k1, batch=8, in_units=32, out_units=128)
    # Ragged case: exercises one-time weight pad/relayout + output slicing.
    _run_case(k2, batch=5, in_units=48, out_units=200)
    # bf16 compute path (f32 accumulation, f32 output), looser tolerance.
    _run_case(k3, batch=8, in_units=256, out_units=256,
              compute_dtype=jnp.bfloat16, atol=2e-2, rtol=2e-2)

    print("KERNEL_OK")
</pallas_src>

<mosaic_0001>
module attributes {stable_mosaic.version = 11 : i64} {
  func.func @_dense_kernel_single(%arg0: i32, %arg1: i32, %arg2: i32, %arg3: memref<8x128xf32, #tpu.memory_space<vmem>>, %arg4: memref<128x128xf32, #tpu.memory_space<vmem>>, %arg5: memref<1x128xf32, #tpu.memory_space<vmem>>, %arg6: memref<8x128xf32, #tpu.memory_space<vmem>>) attributes {dimension_semantics = [#tpu.dimension_semantics<parallel>, #tpu.dimension_semantics<parallel>, #tpu.dimension_semantics<arbitrary>], iteration_bounds = array<i64: 1, 1, 1>, scalar_prefetch = 0 : i64, scratch_operands = 0 : i64, tpu.core_type = #tpu.core_type<tc>, window_params = [{transform_indices = @transform_0, window_bounds = array<i64: 8, 128>}, {transform_indices = @transform_1, window_bounds = array<i64: 128, 128>}, {transform_indices = @transform_2, window_bounds = array<i64: 1, 128>}, {transform_indices = @transform_3, window_bounds = array<i64: 8, 128>}]} {
    %c0 = arith.constant 0 : index
    %c0_0 = arith.constant 0 : index
    %0 = vector.load %arg3[%c0, %c0_0] : memref<8x128xf32, #tpu.memory_space<vmem>>, vector<8x128xf32>
    %c0_1 = arith.constant 0 : index
    %c0_2 = arith.constant 0 : index
    %1 = vector.load %arg4[%c0_1, %c0_2] : memref<128x128xf32, #tpu.memory_space<vmem>>, vector<128x128xf32>
    %cst = arith.constant dense<0.000000e+00> : vector<8x128xf32>
    %2 = tpu.matmul %0, %1, %cst {dimension_numbers = #tpu.dot_dimension_numbers<[1], [0], [0], [1], [0, 0, 1, 1], [], []>} : vector<8x128xf32>, vector<128x128xf32>, vector<8x128xf32> -> vector<8x128xf32>
    %c0_3 = arith.constant 0 : index
    %c0_4 = arith.constant 0 : index
    %3 = vector.load %arg5[%c0_3, %c0_4] : memref<1x128xf32, #tpu.memory_space<vmem>>, vector<1x128xf32>
    %4 = vector.broadcast %3 : vector<1x128xf32> to vector<8x128xf32>
    %5 = arith.addf %2, %4 : vector<8x128xf32>
    %cst_5 = arith.constant 0.000000e+00 : f32
    %6 = vector.broadcast %cst_5 : f32 to vector<8x128xf32>
    %7 = arith.maximumf %5, %6 : vector<8x128xf32>
    %c0_6 = arith.constant 0 : index
    %c0_7 = arith.constant 0 : index
    %8 = vector.load %arg6[%c0_6, %c0_7] : memref<8x128xf32, #tpu.memory_space<vmem>>, vector<8x128xf32>
    tpu.vector_store %arg6[%c0_6, %c0_7], %7 {strides = array<i32>} : memref<8x128xf32, #tpu.memory_space<vmem>>, vector<8x128xf32>,
    return
  }
  func.func @transform_0(%arg0: i32, %arg1: i32, %arg2: i32) -> (i32, i32) {
    %c0_i32 = arith.constant 0 : i32
    return %arg0, %arg2 : i32, i32
  }
  func.func @transform_1(%arg0: i32, %arg1: i32, %arg2: i32) -> (i32, i32) {
    %c0_i32 = arith.constant 0 : i32
    return %arg2, %arg1 : i32, i32
  }
  func.func @transform_2(%arg0: i32, %arg1: i32, %arg2: i32) -> (i32, i32) {
    %c0_i32 = arith.constant 0 : i32
    %c0_i32_0 = arith.constant 0 : i32
    return %c0_i32, %arg1 : i32, i32
  }
  func.func @transform_3(%arg0: i32, %arg1: i32, %arg2: i32) -> (i32, i32) {
    %c0_i32 = arith.constant 0 : i32
    return %arg0, %arg1 : i32, i32
  }
}

</mosaic_0001>

<llo_original>
// kernel: tpu_custom_call.1
$region0: #{tpu_custom_call.1}
  #allocation0 [shape = 'u32[]', space=smem, size = 0x4, offset = 0x4, fixed_abs, tag = 'smem constant byte address 0x4 - core index']
  #allocation1 [shape = 'u32[144,128]{1,0:T(1,128)}', space=vmem, size = 0x12000, scoped, tag = 'internal scratch']
  %s0 = inlined_call_operand.hbm [shape: f32[8,128], index: 0, kind: input, shape index: {}]
  %s1 = inlined_call_operand.hbm [shape: f32[128,128], index: 1, kind: input, shape index: {}]
  %s2 = inlined_call_operand.vmem [shape: f32[1,128], index: 2, kind: input, shape index: {}]
  %s3 = inlined_call_operand.hbm [shape: f32[8,128], index: 3, kind: output, shape index: {}]
  %s4 = sld [smem:[#allocation0]]
  $region30: #{tpu_custom_call.1} parent=0
    _
  %s6 = ssub.s32 1, %s4
  %s7 = scalar_select 0, %s6, %s4
  $region1: #{tpu_custom_call.1} parent=0
    #allocation2 [shape = 'u8[4096]{0}', space=vmem, size = 0x1000, scoped, tag = 'input window, operand 0, single buffered']
    #allocation3 [shape = 's32[1]{0}', space=sflag, size = 0x4, scoped, tag = 'scoped memory for tpu_custom_call.1']
    #allocation4 [shape = 's32[1]{0}', space=sflag, size = 0x4, scoped, tag = 'scoped memory for tpu_custom_call.1']
    #allocation5 [shape = 'u8[65536]{0}', space=vmem, size = 0x10000, scoped, tag = 'input window, operand 1, single buffered']
    #allocation6 [shape = 's32[1]{0}', space=sflag, size = 0x4, scoped, tag = 'scoped memory for tpu_custom_call.1']
    #allocation7 [shape = 'u8[4096]{0}', space=vmem, size = 0x1000, scoped, tag = 'output window, operand 0, single buffered']
    %8 = vsyncpa [#allocation3], 0
    %9 = vsyncpa [#allocation6], 0
    %10 = vsyncpa [#allocation4], 0
    // Predicated region
    $region2: #{tpu_custom_call.1} parent=1 // pred_check
      _
    $region3: #{tpu_custom_call.1} parent=1 // pred_check_branch
      %12 = sbr.rel (0) target = $region5
    $region4: #{tpu_custom_call.1} parent=1 // pred_region
      %s14 = ssub.s32 128, 128
      %15 = vsyncadd [#allocation3], %s14
      %s17 = sshll.u32 [#allocation2], 4
      %s18 = int_to_ptr.vmem [resolvable:$true] %s17
      %20 = dma.hbm_to_vmem [thread:$0]  %s0, 128, %s18, [#allocation3]
    $region5: #{tpu_custom_call.1} parent=1 // pred_fallthru
      _
    // Predicated region
    $region6: #{tpu_custom_call.1} parent=1 // pred_check
      _
    $region7: #{tpu_custom_call.1} parent=1 // pred_check_branch
      %22 = sbr.rel (0) target = $region9
    $region8: #{tpu_custom_call.1} parent=1 // pred_region
      %s24 = ssub.s32 2048, 2048
      %25 = vsyncadd [#allocation6], %s24
      %s26 = sshll.u32 [#allocation5], 4
      %s27 = int_to_ptr.vmem [resolvable:$true] %s26
      %32 = dma.hbm_to_vmem [thread:$0]  %s1, 2048, %s27, [#allocation6], 128, 128, 8
    $region9: #{tpu_custom_call.1} parent=1 // pred_fallthru
      _
    // Predicated region
    $region10: #{tpu_custom_call.1} parent=1 // pred_check
      _
    $region11: #{tpu_custom_call.1} parent=1 // pred_check_branch
      %34 = sbr.rel (0) target = $region13
    $region12: #{tpu_custom_call.1} parent=1 // pred_region
      _
    $region13: #{tpu_custom_call.1} parent=1 // pred_fallthru
      _
    // Predicated region
    $region14: #{tpu_custom_call.1} parent=1 // pred_check
      _
    $region15: #{tpu_custom_call.1} parent=1 // pred_check_branch
      %36 = sbr.rel (0) target = $region17
    $region16: #{tpu_custom_call.1} parent=1 // pred_region
      %37 = dma.done [#allocation3], 128
    $region17: #{tpu_custom_call.1} parent=1 // pred_fallthru
      _
    // Predicated region
    $region18: #{tpu_custom_call.1} parent=1 // pred_check
      _
    $region19: #{tpu_custom_call.1} parent=1 // pred_check_branch
      %39 = sbr.rel (0) target = $region21
    $region20: #{tpu_custom_call.1} parent=1 // pred_region
      %40 = dma.done [#allocation6], 2048
    $region21: #{tpu_custom_call.1} parent=1 // pred_fallthru
      _
    %v41 = vld [vmem:[#allocation2] sm:$0xff]
    %v42 = vld [vmem:[#allocation5] sm:$0xff]
    %v43 = vld [vmem:[#allocation5 + $0x8] sm:$0xff]
    %v44 = vld [vmem:[#allocation5 + $0x10] sm:$0xff]
    %v45 = vld [vmem:[#allocation5 + $0x18] sm:$0xff]
    %v46 = vld [vmem:[#allocation5 + $0x20] sm:$0xff]
    %v47 = vld [vmem:[#allocation5 + $0x28] sm:$0xff]
    %v48 = vld [vmem:[#allocation5 + $0x30] sm:$0xff]
    %v49 = vld [vmem:[#allocation5 + $0x38] sm:$0xff]
    %v50 = vld [vmem:[#allocation5 + $0x40] sm:$0xff]
    %v51 = vld [vmem:[#allocation5 + $0x48] sm:$0xff]
    %v52 = vld [vmem:[#allocation5 + $0x50] sm:$0xff]
    %v53 = vld [vmem:[#allocation5 + $0x58] sm:$0xff]
    %v54 = vld [vmem:[#allocation5 + $0x60] sm:$0xff]
    %v55 = vld [vmem:[#allocation5 + $0x68] sm:$0xff]
    %v56 = vld [vmem:[#allocation5 + $0x70] sm:$0xff]
    %v57 = vld [vmem:[#allocation5 + $0x78] sm:$0xff]
    %v58 = vld [vmem:[%s2] sm:$0x1]
    %v60 = vlaneseq
    %v61 = vshrl.u32 %v60, 7
    %v62 = vsub.s32 0, %v61
    %v63 = vrot.slane %v58, %v62
    %65 = vmatprep.subr.mxu0 0.0
    %66 = vmatpush1.msra.mxu0 %v57
    %67 = vmatprep.subr.mxu0 0.0
    %68 = vmatpush1.msra.mxu0 %v56
    %69 = vmatprep.subr.mxu0 0.0
    %70 = vmatpush1.msra.mxu0 %v55
    %71 = vmatprep.subr.mxu0 0.0
    %72 = vmatpush1.msra.mxu0 %v54
    %73 = vmatprep.subr.mxu0 0.0
    %74 = vmatpush1.msra.mxu0 %v53
    %75 = vmatprep.subr.mxu0 0.0
    %76 = vmatpush1.msra.mxu0 %v52
    %77 = vmatprep.subr.mxu0 0.0
    %78 = vmatpush1.msra.mxu0 %v51
    %79 = vmatprep.subr.mxu0 0.0
    %80 = vmatpush1.msra.mxu0 %v50
    %81 = vmatprep.subr.mxu0 0.0
    %82 = vmatpush1.msra.mxu0 %v49
    %83 = vmatprep.subr.mxu0 0.0
    %84 = vmatpush1.msra.mxu0 %v48
    %85 = vmatprep.subr.mxu0 0.0
    %86 = vmatpush1.msra.mxu0 %v47
    %87 = vmatprep.subr.mxu0 0.0
    %88 = vmatpush1.msra.mxu0 %v46
    %89 = vmatprep.subr.mxu0 0.0
    %90 = vmatpush1.msra.mxu0 %v45
    %91 = vmatprep.subr.mxu0 0.0
    %92 = vmatpush1.msra.mxu0 %v44
    %93 = vmatprep.subr.mxu0 0.0
    %94 = vmatpush1.msra.mxu0 %v43
    %95 = vmatprep.subr.mxu0 0.0
    %96 = vmatpush1.msra.mxu0 %v42
    %97 = vmatprep.subr.mxu0 0.0
    %98 = vmatpush2.msra.mxu0 0.0
    %99 = vmatprep.subr.mxu0 0.0
    %100 = vmatpush2.msra.mxu0 0.0
    %101 = vmatprep.subr.mxu0 0.0
    %102 = vmatpush2.msra.mxu0 0.0
    %103 = vmatprep.subr.mxu0 0.0
    %104 = vmatpush2.msra.mxu0 0.0
    %105 = vmatprep.subr.mxu0 0.0
    %106 = vmatpush2.msra.mxu0 0.0
    %107 = vmatprep.subr.mxu0 0.0
    %108 = vmatpush2.msra.mxu0 0.0
    %109 = vmatprep.subr.mxu0 0.0
    %110 = vmatpush2.msra.mxu0 0.0
    %111 = vmatprep.subr.mxu0 0.0
    %112 = vmatpush2.msra.mxu0 0.0
    %113 = vmatprep.subr.mxu0 0.0
    %114 = vmatpush2.msra.mxu0 0.0
    %115 = vmatprep.subr.mxu0 0.0
    %116 = vmatpush2.msra.mxu0 0.0
    %117 = vmatprep.subr.mxu0 0.0
    %118 = vmatpush2.msra.mxu0 0.0
    %119 = vmatprep.subr.mxu0 0.0
    %120 = vmatpush2.msra.mxu0 0.0
    %121 = vmatprep.subr.mxu0 0.0
    %122 = vmatpush2.msra.mxu0 0.0
    %123 = vmatprep.subr.mxu0 0.0
    %124 = vmatpush2.msra.mxu0 0.0
    %125 = vmatprep.subr.mxu0 0.0
    %126 = vmatpush2.msra.mxu0 0.0
    %127 = vmatprep.subr.mxu0 0.0
    %128 = vmatpush2.msra.mxu0 0.0
    %129 = vmatprep.mubr.f32.mxu0 0.0
    %130 = vmatmul.mubr.f32.gmra.mxu0 %v41
    %v131 = vpop.f32.mrf.mxu0
    %v132 = vadd.f32 %v63, %v131
    %v133 = vpop.f32.mrf.mxu0
    %134 = vdwg.mxu0
    %v135 = vmax.f32 %v132, 0.0
    %136 = vst [vmem:[#allocation7] sm:$0xff] %v135
    // Predicated region
    $region22: #{tpu_custom_call.1} parent=1 // pred_check
      _
    $region23: #{tpu_custom_call.1} parent=1 // pred_check_branch
      %138 = sbr.rel (0) target = $region25
    $region24: #{tpu_custom_call.1} parent=1 // pred_region
      %s140 = ssub.s32 128, 128
      %141 = vsyncadd [#allocation4], %s140
      %s143 = sshll.u32 [#allocation7], 4
      %s144 = int_to_ptr.vmem [resolvable:$true] %s143
      %146 = dma.vmem_to_hbm [thread:$0]  %s144, 128, %s3, [#allocation4]
    $region25: #{tpu_custom_call.1} parent=1 // pred_fallthru
      _
    // Predicated region
    $region26: #{tpu_custom_call.1} parent=1 // pred_check
      _
    $region27: #{tpu_custom_call.1} parent=1 // pred_check_branch
      %148 = sbr.rel (0) target = $region29
    $region28: #{tpu_custom_call.1} parent=1 // pred_region
      %149 = dma.done [#allocation4], 128
    $region29: #{tpu_custom_call.1} parent=1 // pred_fallthru
      _
    %150 = vsyncpa [#allocation3], 1
    %151 = vsyncpa [#allocation6], 1
    %152 = vsyncpa [#allocation4], 1

</llo_original>
